<compile_context>
chip_gen: v5e
topology: v5e:2x2
jax: 0.10.0
libtpu: 0.0.40
codegen_flags: <defaults>
</compile_context>

<pallas_src>
import jax
import jax.numpy as jnp
from jax.experimental import pallas as pl
from jax.experimental.pallas import tpu as pltpu

EPS = 1e-5                       # nn.InstanceNorm2d default
BLOCK_BUDGET_BYTES = 6 << 20     # per (TR, HW) block; 2x in + 2x out ~ 24 MiB
VMEM_LIMIT_BYTES = 48 << 20      # explicit scoped-VMEM limit (v7x-safe, lifts v5e default)


def adain_kernel(img_ref, style_ref, out_ref):
    # img_ref:   (TR, HW)  rows = (sample, channel) pairs, lanes = spatial
    # style_ref: (TR, 2)   column 0 = style scale, column 1 = style shift
    x = img_ref[...]                                             # native dtype
    inv_hw = jnp.float32(1.0 / x.shape[-1])

    st = style_ref[...].astype(jnp.float32)                      # (TR, 2)
    scale = st[:, 0:1]                                           # (TR, 1)
    shift = st[:, 1:2]                                           # (TR, 1)

    # One-pass moments over the spatial (lane) axis, accumulated in f32.
    xf = x.astype(jnp.float32)                                   # no-op for f32 inputs
    s1 = jnp.sum(xf, axis=-1, keepdims=True)                     # (TR, 1)
    s2 = jnp.sum(xf * xf, axis=-1, keepdims=True)                # (TR, 1)
    mean = s1 * inv_hw
    # Clamp: E[x^2] - mean^2 can come out slightly negative (cancellation).
    var = jnp.maximum(s2 * inv_hw - mean * mean, 0.0)
    r = jax.lax.rsqrt(var + EPS)

    # Fold style into a single FMA:  out = x * a + b
    a = scale * r                                                # (TR, 1)
    b = shift - a * mean                                         # (TR, 1)
    out_ref[...] = (x * a.astype(x.dtype) + b.astype(x.dtype)).astype(out_ref.dtype)


def _choose_row_tile(rows, hw, itemsize, block_budget_bytes=BLOCK_BUDGET_BYTES):
    """Pick a sublane-dense row tile.

    Prefers divisors of `rows` that are multiples of 8 and fit the per-block
    byte budget (no padding -> no extra HBM pass); among those, prefers ones
    that give an even grid (>= 2 steps) so both v7x TensorCores get work.
    Tiny/odd row counts use a single full-extent block; padding is a rare
    fallback.  Returns (TR, padded_rows).
    """
    bytes_per_row = max(hw * itemsize, 1)
    max_tr = max(block_budget_bytes // bytes_per_row, 8)

    if rows % 8 == 0:
        fits = [d for d in range(8, min(rows, max_tr) + 1, 8) if rows % d == 0]
        if fits:
            even = [d for d in fits if (rows // d) % 2 == 0]
            tr = max(even) if even else max(fits)
            return tr, rows

    if rows <= max_tr:
        # Tiny / non-multiple-of-8 row count: single full-extent block.
        return rows, rows

    # Rare fallback: pad the row axis up to a multiple of a byte-sized tile.
    tr = max((max_tr // 8) * 8, 8)
    padded = pl.cdiv(rows, tr) * tr
    return tr, padded


def adain(image, w, scale_weight, scale_bias, shift_weight, shift_bias):
    """
    image:        (N, C, H, W)   (NCHW, PyTorch convention)
    w:            (N, W_DIM)
    scale_weight: (C, W_DIM)     nn.Linear weight (PyTorch layout)
    scale_bias:   (C,)
    shift_weight: (C, W_DIM)
    shift_bias:   (C,)
    returns:      (N, C, H, W)
    """
    N, C, H, W = image.shape
    HW = H * W
    rows = N * C

    # --- style Linears for the whole batch: one fused matmul in XLA ---
    w_cat = jnp.concatenate([scale_weight, shift_weight], axis=0)      # (2C, W_DIM)
    b_cat = jnp.concatenate([scale_bias, shift_bias], axis=0)          # (2C,)
    style = jnp.dot(w.astype(jnp.float32), w_cat.T.astype(jnp.float32),
                    preferred_element_type=jnp.float32) + b_cat        # (N, 2C)
    # Merge into one (rows, 2) array: col 0 = scale, col 1 = shift.
    style2 = jnp.stack([style[:, :C].reshape(rows),
                        style[:, C:].reshape(rows)], axis=-1)          # (rows, 2)

    # --- (N, C) packed on the sublane axis; spatial stays lane-dense ---
    img_flat = image.reshape(rows, HW)

    TR, rows_padded = _choose_row_tile(rows, HW, image.dtype.itemsize)
    if rows_padded != rows:
        pad = rows_padded - rows
        img_flat = jnp.pad(img_flat, ((0, pad), (0, 0)))
        style2 = jnp.pad(style2, ((0, pad), (0, 0)))    # padded rows -> output 0, sliced off

    out_flat = pl.pallas_call(
        adain_kernel,
        out_shape=jax.ShapeDtypeStruct((rows_padded, HW), image.dtype),
        grid_spec=pltpu.PrefetchScalarGridSpec(
            num_scalar_prefetch=0,
            grid=(rows_padded // TR,),
            in_specs=[
                pl.BlockSpec((TR, HW), lambda r: (r, 0)),   # image rows
                pl.BlockSpec((TR, 2), lambda r: (r, 0)),    # [scale, shift] per row
            ],
            out_specs=pl.BlockSpec((TR, HW), lambda r: (r, 0)),
        ),
        compiler_params=pltpu.CompilerParams(
            dimension_semantics=("parallel",),
            vmem_limit_bytes=VMEM_LIMIT_BYTES,
        ),
    )(img_flat, style2)

    return out_flat[:rows].reshape(N, C, H, W)


def adain_reference(image, w, scale_weight, scale_bias, shift_weight, shift_bias):
    """Pure-JAX reference mirroring the PyTorch forward."""
    mean = jnp.mean(image, axis=(2, 3), keepdims=True)
    var = jnp.mean((image - mean) ** 2, axis=(2, 3), keepdims=True)
    normalized = (image - mean) / jnp.sqrt(var + EPS)
    style_scale = (w @ scale_weight.T + scale_bias)[:, :, None, None]
    style_shift = (w @ shift_weight.T + shift_bias)[:, :, None, None]
    return style_scale * normalized + style_shift


if __name__ == "__main__":
    # Small shapes consistent with the module: N=2, C=4, H=W=16, w_dim=8.
    N, C, H, W, W_DIM = 2, 4, 16, 16, 8

    key = jax.random.PRNGKey(0)
    k_img, k_w, k_sw, k_sb, k_hw, k_hb = jax.random.split(key, 6)

    image = jax.random.normal(k_img, (N, C, H, W), dtype=jnp.float32)
    w_vec = jax.random.normal(k_w, (N, W_DIM), dtype=jnp.float32)

    bound = 1.0 / jnp.sqrt(W_DIM)
    scale_weight = jax.random.uniform(k_sw, (C, W_DIM), jnp.float32, -bound, bound)
    scale_bias = jax.random.uniform(k_sb, (C,), jnp.float32, -bound, bound)
    shift_weight = jax.random.uniform(k_hw, (C, W_DIM), jnp.float32, -bound, bound)
    shift_bias = jax.random.uniform(k_hb, (C,), jnp.float32, -bound, bound)

    out = adain(image, w_vec, scale_weight, scale_bias, shift_weight, shift_bias)
    out = jax.block_until_ready(out)

    ref = adain_reference(image, w_vec, scale_weight, scale_bias,
                          shift_weight, shift_bias)
    assert out.shape == (N, C, H, W)
    assert jnp.allclose(out, ref, atol=1e-4, rtol=1e-4)

    print("KERNEL_OK")
</pallas_src>

<mosaic_0001>
module attributes {stable_mosaic.version = 11 : i64} {
  func.func @adain_kernel(%arg0: i32, %arg1: memref<8x256xf32, #tpu.memory_space<vmem>>, %arg2: memref<8x2xf32, #tpu.memory_space<vmem>>, %arg3: memref<8x256xf32, #tpu.memory_space<vmem>>) attributes {dimension_semantics = [#tpu.dimension_semantics<parallel>], iteration_bounds = array<i64: 1>, scalar_prefetch = 0 : i64, scratch_operands = 0 : i64, tpu.core_type = #tpu.core_type<tc>, window_params = [{transform_indices = @transform_0, window_bounds = array<i64: 8, 256>}, {transform_indices = @transform_1, window_bounds = array<i64: 8, 2>}, {transform_indices = @transform_2, window_bounds = array<i64: 8, 256>}]} {
    %c0 = arith.constant 0 : index
    %c0_0 = arith.constant 0 : index
    %0 = vector.load %arg1[%c0, %c0_0] : memref<8x256xf32, #tpu.memory_space<vmem>>, vector<8x256xf32>
    %c0_1 = arith.constant 0 : index
    %c0_2 = arith.constant 0 : index
    %1 = vector.load %arg2[%c0_1, %c0_2] : memref<8x2xf32, #tpu.memory_space<vmem>>, vector<8x2xf32>
    %2 = vector.extract_strided_slice %1 {offsets = [0, 0], sizes = [8, 1], strides = [1, 1]} : vector<8x2xf32> to vector<8x1xf32>
    %3 = vector.extract_strided_slice %1 {offsets = [0, 1], sizes = [8, 1], strides = [1, 1]} : vector<8x2xf32> to vector<8x1xf32>
    %cst = arith.constant dense<0.000000e+00> : vector<8xf32>
    %4 = vector.multi_reduction <add>, %0, %cst [1] : vector<8x256xf32> to vector<8xf32>
    %5 = vector.shape_cast %4 : vector<8xf32> to vector<8x1xf32>
    %6 = arith.mulf %0, %0 : vector<8x256xf32>
    %cst_3 = arith.constant dense<0.000000e+00> : vector<8xf32>
    %7 = vector.multi_reduction <add>, %6, %cst_3 [1] : vector<8x256xf32> to vector<8xf32>
    %8 = vector.shape_cast %7 : vector<8xf32> to vector<8x1xf32>
    %cst_4 = arith.constant 3.906250e-03 : f32
    %9 = vector.broadcast %cst_4 : f32 to vector<8x1xf32>
    %10 = arith.mulf %5, %9 : vector<8x1xf32>
    %cst_5 = arith.constant 3.906250e-03 : f32
    %11 = vector.broadcast %cst_5 : f32 to vector<8x1xf32>
    %12 = arith.mulf %8, %11 : vector<8x1xf32>
    %13 = arith.mulf %10, %10 : vector<8x1xf32>
    %14 = arith.subf %12, %13 : vector<8x1xf32>
    %cst_6 = arith.constant 0.000000e+00 : f32
    %15 = vector.broadcast %cst_6 : f32 to vector<8x1xf32>
    %16 = arith.maximumf %14, %15 : vector<8x1xf32>
    %cst_7 = arith.constant 9.99999974E-6 : f32
    %17 = vector.broadcast %cst_7 : f32 to vector<8x1xf32>
    %18 = arith.addf %16, %17 : vector<8x1xf32>
    %19 = math.rsqrt %18 : vector<8x1xf32>
    %20 = arith.mulf %2, %19 : vector<8x1xf32>
    %21 = arith.mulf %20, %10 : vector<8x1xf32>
    %22 = arith.subf %3, %21 : vector<8x1xf32>
    %23 = vector.broadcast %20 : vector<8x1xf32> to vector<8x256xf32>
    %24 = arith.mulf %0, %23 : vector<8x256xf32>
    %25 = vector.broadcast %22 : vector<8x1xf32> to vector<8x256xf32>
    %26 = arith.addf %24, %25 : vector<8x256xf32>
    %c0_8 = arith.constant 0 : index
    %c0_9 = arith.constant 0 : index
    %27 = vector.load %arg3[%c0_8, %c0_9] : memref<8x256xf32, #tpu.memory_space<vmem>>, vector<8x256xf32>
    tpu.vector_store %arg3[%c0_8, %c0_9], %26 {strides = array<i32>} : memref<8x256xf32, #tpu.memory_space<vmem>>, vector<8x256xf32>,
    return
  }
  func.func @transform_0(%arg0: i32) -> (i32, i32) {
    %c0_i32 = arith.constant 0 : i32
    %c0_i32_0 = arith.constant 0 : i32
    return %arg0, %c0_i32 : i32, i32
  }
  func.func @transform_1(%arg0: i32) -> (i32, i32) {
    %c0_i32 = arith.constant 0 : i32
    %c0_i32_0 = arith.constant 0 : i32
    return %arg0, %c0_i32 : i32, i32
  }
  func.func @transform_2(%arg0: i32) -> (i32, i32) {
    %c0_i32 = arith.constant 0 : i32
    %c0_i32_0 = arith.constant 0 : i32
    return %arg0, %c0_i32 : i32, i32
  }
}

</mosaic_0001>

<llo_original>
// kernel: tpu_custom_call.1
$region0: #{tpu_custom_call.1}
  #allocation0 [shape = 'u32[]', space=smem, size = 0x4, offset = 0x4, fixed_abs, tag = 'smem constant byte address 0x4 - core index']
  #allocation1 [shape = 'u32[72,128]{1,0:T(1,128)}', space=vmem, size = 0x9000, scoped, tag = 'internal scratch']
  %s0 = inlined_call_operand.hbm [shape: f32[8,256], index: 0, kind: input, shape index: {}]
  %s1 = inlined_call_operand.vmem [shape: f32[8,2], index: 1, kind: input, shape index: {}]
  %s2 = inlined_call_operand.hbm [shape: f32[8,256], index: 2, kind: output, shape index: {}]
  %s3 = sld [smem:[#allocation0]]
  $region22: #{tpu_custom_call.1} parent=0
    _
  %s5 = ssub.s32 1, %s3
  %s6 = scalar_select 0, %s5, %s3
  $region1: #{tpu_custom_call.1} parent=0
    #allocation2 [shape = 'u8[8192]{0}', space=vmem, size = 0x2000, scoped, tag = 'input window, operand 0, single buffered']
    #allocation3 [shape = 's32[1]{0}', space=sflag, size = 0x4, scoped, tag = 'scoped memory for tpu_custom_call.1']
    #allocation4 [shape = 's32[1]{0}', space=sflag, size = 0x4, scoped, tag = 'scoped memory for tpu_custom_call.1']
    #allocation5 [shape = 'u8[8192]{0}', space=vmem, size = 0x2000, scoped, tag = 'output window, operand 0, single buffered']
    %7 = vsyncpa [#allocation3], 0
    %8 = vsyncpa [#allocation4], 0
    // Predicated region
    $region2: #{tpu_custom_call.1} parent=1 // pred_check
      _
    $region3: #{tpu_custom_call.1} parent=1 // pred_check_branch
      %10 = sbr.rel (0) target = $region5
    $region4: #{tpu_custom_call.1} parent=1 // pred_region
      %12 = vsyncadd [#allocation3], 0
      %s14 = sshll.u32 %s0, 4
      %s15 = int_to_ptr.hbm [resolvable:$true] %s14
      %s16 = sshll.u32 [#allocation2], 4
      %s17 = int_to_ptr.vmem [resolvable:$true] %s16
      %19 = dma.hbm_to_vmem [thread:$0]  %s15, 256, %s17, [#allocation3]
    $region5: #{tpu_custom_call.1} parent=1 // pred_fallthru
      _
    // Predicated region
    $region6: #{tpu_custom_call.1} parent=1 // pred_check
      _
    $region7: #{tpu_custom_call.1} parent=1 // pred_check_branch
      %21 = sbr.rel (0) target = $region9
    $region8: #{tpu_custom_call.1} parent=1 // pred_region
      _
    $region9: #{tpu_custom_call.1} parent=1 // pred_fallthru
      _
    // Predicated region
    $region10: #{tpu_custom_call.1} parent=1 // pred_check
      _
    $region11: #{tpu_custom_call.1} parent=1 // pred_check_branch
      %23 = sbr.rel (0) target = $region13
    $region12: #{tpu_custom_call.1} parent=1 // pred_region
      %25 = dma.done [#allocation3], 256
    $region13: #{tpu_custom_call.1} parent=1 // pred_fallthru
      _
    %v26 = vld [vmem:[#allocation2] sm:$0xff]
    %v27 = vld [vmem:[#allocation2 + $0x8] sm:$0xff]
    %v28 = vld [vmem:[%s1] sm:$0xff]
    %v29 = vadd.f32 %v26, %v27
    %30 = vadd.xlane.f32.xlu0 %v29
    %v31 = vpop.xlane.xlu0 %30
    %v32 = vmul.f32 %v26, %v26
    %v33 = vmul.f32 %v27, %v27
    %v34 = vadd.f32 %v32, %v33
    %35 = vadd.xlane.f32.xlu0 %v34
    %v36 = vpop.xlane.xlu0 %35
    %v37 = vmul.f32 %v31, 0.00390625
    %v38 = vmul.f32 %v36, 0.00390625
    %v39 = vmul.f32 %v37, %v37
    %v40 = vsub.f32 %v38, %v39
    %v41 = vmax.f32 %v40, 0.0
    %v42 = vadd.f32 %v41, 1e-05
    %v43 = vrsqrt.pop %v42
    %v44 = vmul.f32 %v43, %v42
    %v45 = vmul.f32 %v44, %v43
    %v46 = vmul.f32 0.5, %v45
    %v47 = vsub.f32 1.5, %v46
    %v48 = vmul.f32 %v43, %v47
    %vm49 = vweird.f32 %v42
    %vm50 = vweird.f32 %v43
    %vm51 = vmor %vm49, %vm50
    %v52 = vsel %vm51, %v43, %v48
    %v53 = vmul.f32 %v28, %v52
    %v54 = vmul.f32 %v53, %v37
    %56 = vrot.lane.b32.xlu0 %v54, 1
    %v57 = vpop.permute.xlu0 %56
    %v59 = vsub.f32 %v28, %v57
    %61 = vset.pattern.permute.xlu0 0
    %62 = vperm.xlu0 %61, %v53
    %v63 = vpop.permute.xlu0 %62
    %v65 = vmul.f32 %v26, %v63
    %v66 = vmul.f32 %v27, %v63
    %68 = vset.pattern.permute.xlu0 1
    %69 = vperm.xlu0 %68, %v59
    %v70 = vpop.permute.xlu0 %69
    %v72 = vadd.f32 %v65, %v70
    %v73 = vadd.f32 %v66, %v70
    %74 = vst [vmem:[#allocation5] sm:$0xff] %v72
    %75 = vst [vmem:[#allocation5 + $0x8] sm:$0xff] %v73
    // Predicated region
    $region14: #{tpu_custom_call.1} parent=1 // pred_check
      _
    $region15: #{tpu_custom_call.1} parent=1 // pred_check_branch
      %77 = sbr.rel (0) target = $region17
    $region16: #{tpu_custom_call.1} parent=1 // pred_region
      %79 = vsyncadd [#allocation4], 0
      %s81 = sshll.u32 [#allocation5], 4
      %s82 = int_to_ptr.vmem [resolvable:$true] %s81
      %s83 = sshll.u32 %s2, 4
      %s84 = int_to_ptr.hbm [resolvable:$true] %s83
      %86 = dma.vmem_to_hbm [thread:$0]  %s82, 256, %s84, [#allocation4]
    $region17: #{tpu_custom_call.1} parent=1 // pred_fallthru
      _
    // Predicated region
    $region18: #{tpu_custom_call.1} parent=1 // pred_check
      _
    $region19: #{tpu_custom_call.1} parent=1 // pred_check_branch
      %88 = sbr.rel (0) target = $region21
    $region20: #{tpu_custom_call.1} parent=1 // pred_region
      %90 = dma.done [#allocation4], 256
    $region21: #{tpu_custom_call.1} parent=1 // pred_fallthru
      _
    %91 = vsyncpa [#allocation3], 1
    %92 = vsyncpa [#allocation4], 1

</llo_original>
